<compile_context>
chip_gen: v6e
topology: v6e:2x2x1
jax: 0.10.0
libtpu: 0.0.40
codegen_flags: <defaults>
</compile_context>

<pallas_src>
import jax
import jax.numpy as jnp
from jax.experimental import pallas as pl
from jax.experimental.pallas import tpu as pltpu


_TARGET_TILE_BYTES = 2 << 20      # ~2 MiB of x per grid step
_MIN_PALLAS_BYTES = 256 << 10     # below this, plain XLA is pure win


def _film_kernel(g_ref, b_ref, x_ref, o_ref):
    # g_ref, b_ref: (TM, 1) f32 — broadcast over the TL lanes is native VPU work.
    # x_ref, o_ref: (TM, TL)
    xf = x_ref[...].astype(jnp.float32)
    o_ref[...] = (g_ref[...] * xf + b_ref[...]).astype(o_ref.dtype)


def _round_up(n: int, m: int) -> int:
    return ((n + m - 1) // m) * m


def _choose_tiles(M: int, L: int, itemsize: int,
                  target_bytes: int = _TARGET_TILE_BYTES) -> tuple[int, int]:
    """Pick (TM, TL): TL a 128-multiple, TM a sublane-packed multiple, ~target_bytes of x/tile."""
    sub = 8 * max(1, 4 // itemsize)            # 8 (f32), 16 (bf16), 32 (int8/fp8)
    tl = min(_round_up(L, 128), 4096)          # lane-dense tile along L
    rows = max(1, target_bytes // (tl * itemsize))
    tm = min(_round_up(rows, sub), _round_up(M, sub))
    # Guarantee >=2 grid steps when the problem allows, so v7x's two TensorCores are both fed.
    if pl.cdiv(M, tm) * pl.cdiv(L, tl) < 2:
        if M > sub:
            tm = _round_up(pl.cdiv(M, 2), sub)
        elif L > 128:
            tl = _round_up(pl.cdiv(L, 2), 128)
    return tm, tl


def condition_embedder(x, noise_scale, w, b, *, use_pallas=None):
    """FiLM conditioning (ConditionEmbedder forward).

    x:           (B, C, L)   input tensor
    noise_scale: (B, N)      noise-scale embedding (N = 512)
    w:           (N, 2C)     GammaBeta linear weight (gb = noise_scale @ w + b)
    b:           (2C,)       GammaBeta linear bias
    use_pallas:  None = auto (size-gated), True/False = force.
    returns:     (B, C, L)   gamma * x + beta
    """
    B, C, L = x.shape
    itemsize = jnp.dtype(x.dtype).itemsize

    # --- GammaBeta head in plain XLA (hoisted; tiny, better MXU utilization at M=B) ---
    gb = (
        jnp.dot(
            noise_scale.astype(jnp.float32),
            w.astype(jnp.float32),
            preferred_element_type=jnp.float32,
        )
        + b.astype(jnp.float32)
    )  # (B, 2C)
    gamma = gb[:, :C]  # (B, C)
    beta = gb[:, C:]   # (B, C)

    if use_pallas is None:
        use_pallas = (B * C * L * itemsize) >= _MIN_PALLAS_BYTES
    if not use_pallas:
        # Tiny tensors: launch overhead dominates; XLA's fused elementwise is already at roofline.
        return (gamma[:, :, None] * x + beta[:, :, None]).astype(x.dtype)

    # --- Collapse FiLM to 2D: rows = B*C on sublanes, L on lanes ---
    M = B * C
    x2 = x.reshape(M, L)
    g2 = gamma.reshape(M, 1)
    b2 = beta.reshape(M, 1)

    tm, tl = _choose_tiles(M, L, itemsize)
    grid = (pl.cdiv(M, tm), pl.cdiv(L, tl))   # L innermost: gamma/beta never re-DMA'd across L

    cost = pl.CostEstimate(
        flops=2 * M * L,
        transcendentals=0,
        bytes_accessed=2 * M * L * itemsize + 2 * M * 4,
    )

    out2 = pl.pallas_call(
        _film_kernel,
        out_shape=jax.ShapeDtypeStruct((M, L), x.dtype),
        grid_spec=pltpu.PrefetchScalarGridSpec(
            num_scalar_prefetch=0,
            grid=grid,
            in_specs=[
                pl.BlockSpec((tm, 1), lambda i, li: (i, 0)),    # gamma (L-invariant)
                pl.BlockSpec((tm, 1), lambda i, li: (i, 0)),    # beta  (L-invariant)
                pl.BlockSpec((tm, tl), lambda i, li: (i, li)),  # x tile
            ],
            out_specs=pl.BlockSpec((tm, tl), lambda i, li: (i, li)),
        ),
        compiler_params=pltpu.CompilerParams(
            dimension_semantics=("parallel", "parallel"),
        ),
        cost_estimate=cost,
    )(g2, b2, x2)

    return out2.reshape(B, C, L)


if __name__ == "__main__":
    key = jax.random.PRNGKey(0)
    B, C, L, N = 2, 4, 16, 512  # in_c=4, sample length L=16, noise embedding dim 512

    k_x, k_ns, k_w, k_b = jax.random.split(key, 4)
    x = jax.random.normal(k_x, (B, C, L), jnp.float32)
    noise_scale = jax.random.normal(k_ns, (B, N), jnp.float32)

    # Deterministic Linear(512, 2*C) init (PyTorch-style uniform(-1/sqrt(N), 1/sqrt(N))).
    bound = 1.0 / jnp.sqrt(jnp.float32(N))
    w = jax.random.uniform(k_w, (N, 2 * C), jnp.float32, -bound, bound)
    b = jax.random.uniform(k_b, (2 * C,), jnp.float32, -bound, bound)

    # Force the Pallas path so the kernel itself is exercised even at this tiny demo shape.
    out = condition_embedder(x, noise_scale, w, b, use_pallas=True)
    out = jax.block_until_ready(out)

    # Size-gated (auto) path at this shape is the XLA fallback.
    out_auto = jax.block_until_ready(condition_embedder(x, noise_scale, w, b))

    # Pure-JAX reference check.
    gb_ref = noise_scale @ w + b
    gamma_ref = gb_ref[:, :C][:, :, None]
    beta_ref = gb_ref[:, C:][:, :, None]
    ref = gamma_ref * x + beta_ref
    assert out.shape == (B, C, L)
    assert jnp.allclose(out, ref, atol=1e-5, rtol=1e-5), "pallas path mismatch vs reference"
    assert jnp.allclose(out_auto, ref, atol=1e-5, rtol=1e-5), "fallback path mismatch vs reference"

    print("KERNEL_OK")
</pallas_src>

<mosaic_0001>
module attributes {stable_mosaic.version = 11 : i64} {
  func.func @_film_kernel(%arg0: i32, %arg1: i32, %arg2: memref<8x1xf32, #tpu.memory_space<vmem>>, %arg3: memref<8x1xf32, #tpu.memory_space<vmem>>, %arg4: memref<8x128xf32, #tpu.memory_space<vmem>>, %arg5: memref<8x128xf32, #tpu.memory_space<vmem>>) attributes {dimension_semantics = [#tpu.dimension_semantics<parallel>, #tpu.dimension_semantics<parallel>], iteration_bounds = array<i64: 1, 1>, scalar_prefetch = 0 : i64, scratch_operands = 0 : i64, tpu.core_type = #tpu.core_type<tc>, window_params = [{transform_indices = @transform_0, window_bounds = array<i64: 8, 1>}, {transform_indices = @transform_1, window_bounds = array<i64: 8, 1>}, {transform_indices = @transform_2, window_bounds = array<i64: 8, 128>}, {transform_indices = @transform_3, window_bounds = array<i64: 8, 128>}]} {
    %c0 = arith.constant 0 : index
    %c0_0 = arith.constant 0 : index
    %0 = vector.load %arg4[%c0, %c0_0] : memref<8x128xf32, #tpu.memory_space<vmem>>, vector<8x128xf32>
    %c0_1 = arith.constant 0 : index
    %c0_2 = arith.constant 0 : index
    %1 = vector.load %arg2[%c0_1, %c0_2] : memref<8x1xf32, #tpu.memory_space<vmem>>, vector<8x1xf32>
    %2 = vector.broadcast %1 : vector<8x1xf32> to vector<8x128xf32>
    %3 = arith.mulf %2, %0 : vector<8x128xf32>
    %c0_3 = arith.constant 0 : index
    %c0_4 = arith.constant 0 : index
    %4 = vector.load %arg3[%c0_3, %c0_4] : memref<8x1xf32, #tpu.memory_space<vmem>>, vector<8x1xf32>
    %5 = vector.broadcast %4 : vector<8x1xf32> to vector<8x128xf32>
    %6 = arith.addf %3, %5 : vector<8x128xf32>
    %c0_5 = arith.constant 0 : index
    %c0_6 = arith.constant 0 : index
    %7 = vector.load %arg5[%c0_5, %c0_6] : memref<8x128xf32, #tpu.memory_space<vmem>>, vector<8x128xf32>
    tpu.vector_store %arg5[%c0_5, %c0_6], %6 {strides = array<i32>} : memref<8x128xf32, #tpu.memory_space<vmem>>, vector<8x128xf32>,
    return
  }
  func.func @transform_0(%arg0: i32, %arg1: i32) -> (i32, i32) {
    %c0_i32 = arith.constant 0 : i32
    %c0_i32_0 = arith.constant 0 : i32
    return %arg0, %c0_i32 : i32, i32
  }
  func.func @transform_1(%arg0: i32, %arg1: i32) -> (i32, i32) {
    %c0_i32 = arith.constant 0 : i32
    %c0_i32_0 = arith.constant 0 : i32
    return %arg0, %c0_i32 : i32, i32
  }
  func.func @transform_2(%arg0: i32, %arg1: i32) -> (i32, i32) {
    %c0_i32 = arith.constant 0 : i32
    return %arg0, %arg1 : i32, i32
  }
  func.func @transform_3(%arg0: i32, %arg1: i32) -> (i32, i32) {
    %c0_i32 = arith.constant 0 : i32
    return %arg0, %arg1 : i32, i32
  }
}

</mosaic_0001>

<llo_original>
// kernel: tpu_custom_call.1
$region0: #{tpu_custom_call.1}
  #allocation0 [shape = 'u32[]', space=smem, size = 0x4, offset = 0x4, fixed_abs, tag = 'smem constant byte address 0x4 - core index']
  #allocation1 [shape = 'u32[144,128]{1,0:T(1,128)}', space=vmem, size = 0x12000, scoped, tag = 'internal scratch']
  %s0 = inlined_call_operand.vmem [shape: f32[8,1], index: 0, kind: input, shape index: {}]
  %s1 = inlined_call_operand.vmem [shape: f32[8,1], index: 1, kind: input, shape index: {}]
  %s2 = inlined_call_operand.vmem [shape: f32[8,16], index: 2, kind: input, shape index: {}]
  %s3 = inlined_call_operand.hbm [shape: f32[8,16], index: 3, kind: output, shape index: {}]
  %s4 = sld [smem:[#allocation0]]
  $region22: #{tpu_custom_call.1} parent=0
    _
  %s6 = ssub.s32 1, %s4
  %s7 = scalar_select 0, %s6, %s4
  $region1: #{tpu_custom_call.1} parent=0
    #allocation2 [shape = 'u8[4096]{0}', space=vmem, size = 0x1000, scoped, tag = 'output window, operand 0, single buffered']
    #allocation3 [shape = 's32[1]{0}', space=sflag, size = 0x4, scoped, tag = 'scoped memory for tpu_custom_call.1']
    %8 = vsyncpa [#allocation3], 0
    // Predicated region
    $region2: #{tpu_custom_call.1} parent=1 // pred_check
      _
    $region3: #{tpu_custom_call.1} parent=1 // pred_check_branch
      %10 = sbr.rel (0) target = $region5
    $region4: #{tpu_custom_call.1} parent=1 // pred_region
      _
    $region5: #{tpu_custom_call.1} parent=1 // pred_fallthru
      _
    // Predicated region
    $region6: #{tpu_custom_call.1} parent=1 // pred_check
      _
    $region7: #{tpu_custom_call.1} parent=1 // pred_check_branch
      %12 = sbr.rel (0) target = $region9
    $region8: #{tpu_custom_call.1} parent=1 // pred_region
      _
    $region9: #{tpu_custom_call.1} parent=1 // pred_fallthru
      _
    // Predicated region
    $region10: #{tpu_custom_call.1} parent=1 // pred_check
      _
    $region11: #{tpu_custom_call.1} parent=1 // pred_check_branch
      %14 = sbr.rel (0) target = $region13
    $region12: #{tpu_custom_call.1} parent=1 // pred_region
      _
    $region13: #{tpu_custom_call.1} parent=1 // pred_fallthru
      _
    %v15 = vld [vmem:[%s2] sm:$0xff]
    %v16 = vld [vmem:[%s0] sm:$0xff]
    %18 = vset.pattern.permute.xlu0 0
    %19 = vperm.xlu0 %18, %v16
    %v20 = vpop.permute.xlu0 %19
    %v22 = vmul.f32 %v20, %v15
    %v23 = vld [vmem:[%s1] sm:$0xff]
    %25 = vset.pattern.permute.xlu0 0
    %26 = vperm.xlu0 %25, %v23
    %v27 = vpop.permute.xlu0 %26
    %v29 = vadd.f32 %v22, %v27
    %30 = vst [vmem:[#allocation2] sm:$0xff] %v29
    // Predicated region
    $region14: #{tpu_custom_call.1} parent=1 // pred_check
      _
    $region15: #{tpu_custom_call.1} parent=1 // pred_check_branch
      %32 = sbr.rel (0) target = $region17
    $region16: #{tpu_custom_call.1} parent=1 // pred_region
      %s34 = ssub.s32 128, 128
      %35 = vsyncadd [#allocation3], %s34
      %s37 = sshll.u32 [#allocation2], 4
      %s38 = int_to_ptr.vmem [resolvable:$true] %s37
      %40 = dma.vmem_to_hbm [thread:$0]  %s38, 128, %s3, [#allocation3]
    $region17: #{tpu_custom_call.1} parent=1 // pred_fallthru
      _
    // Predicated region
    $region18: #{tpu_custom_call.1} parent=1 // pred_check
      _
    $region19: #{tpu_custom_call.1} parent=1 // pred_check_branch
      %42 = sbr.rel (0) target = $region21
    $region20: #{tpu_custom_call.1} parent=1 // pred_region
      %43 = dma.done [#allocation3], 128
    $region21: #{tpu_custom_call.1} parent=1 // pred_fallthru
      _
    %44 = vsyncpa [#allocation3], 1

</llo_original>
